<compile_context>
chip_gen: v7x
topology: tpu7x:2x2x1
jax: 0.10.0
libtpu: 0.0.40
codegen_flags: <defaults>
</compile_context>

<pallas_src>
import functools

import jax
import jax.numpy as jnp
from jax.experimental import pallas as pl
from jax.experimental.pallas import tpu as pltpu


def _critic_kernel(s_ref, a_ref, w1s_ref, w1a_ref, b1_ref, w2_ref, b2_ref,
                   w3_ref, b3_ref, out_ref):
    # Layer 1: split matmul over [state | action] (no wrapper-side concat).
    s = s_ref[...].astype(jnp.bfloat16)
    a = a_ref[...].astype(jnp.bfloat16)
    h1 = jnp.dot(s, w1s_ref[...], preferred_element_type=jnp.float32)
    h1 = h1 + jnp.dot(a, w1a_ref[...], preferred_element_type=jnp.float32)
    h1 = jnp.maximum(h1 + b1_ref[...], 0.0)

    # Layer 2: (bb, 256) @ (256, 256), bf16 operands, f32 accumulation.
    h2 = jnp.dot(h1.astype(jnp.bfloat16), w2_ref[...],
                 preferred_element_type=jnp.float32)
    h2 = jnp.maximum(h2 + b2_ref[...], 0.0)

    # Layer 3: contract w3 (1, H) against h2 (bb, H) over H -> lane-dense
    # (1, bb) row (avoids an N=1 MXU matmul and a lane-sparse (bb, 1) store).
    q = jax.lax.dot_general(
        w3_ref[...], h2,
        dimension_numbers=(((1,), (1,)), ((), ())),
        preferred_element_type=jnp.float32)
    out_ref[...] = (q + b3_ref[0, 0]).astype(out_ref.dtype)


def _round_up(x, m):
    return ((x + m - 1) // m) * m


@functools.partial(jax.jit, static_argnames=("block_b",))
def critic_forward(state, action, params, block_b=1024):
    """Fused MLP critic.  state: (B, S), action: (B, A) -> (B, 1) f32."""
    assert block_b % 128 == 0, "batch tile must be a multiple of 128 (lanes)"
    w1s, w1a, b1, w2, b2, w3_row, b3 = params

    B = state.shape[0]
    S = state.shape[1]
    A = action.shape[1]
    H = w2.shape[0]

    # Tile: multiple of 128 (so the lane-dense output block is aligned),
    # clamped so the grid keeps >= 2 steps when the batch allows it (v7x has
    # 2 TensorCores; the batch axis is "parallel").
    half_tile = _round_up(max(-(-B // 2), 1), 128)
    bb = min(block_b, half_tile)
    b_pad = _round_up(B, bb)
    if b_pad != B:
        state = jnp.pad(state, ((0, b_pad - B), (0, 0)))
        action = jnp.pad(action, ((0, b_pad - B), (0, 0)))

    grid = (b_pad // bb,)

    in_specs = [
        pl.BlockSpec((bb, S), lambda i: (i, 0)),    # state tile (f32)
        pl.BlockSpec((bb, A), lambda i: (i, 0)),    # action tile (f32)
        pl.BlockSpec((S, H), lambda i: (0, 0)),     # W1_state (bf16)
        pl.BlockSpec((A, H), lambda i: (0, 0)),     # W1_action (bf16)
        pl.BlockSpec((1, H), lambda i: (0, 0)),     # b1 (f32)
        pl.BlockSpec((H, H), lambda i: (0, 0)),     # W2 (bf16)
        pl.BlockSpec((1, H), lambda i: (0, 0)),     # b2 (f32)
        pl.BlockSpec((1, H), lambda i: (0, 0)),     # W3 as a (1, H) row (f32)
        pl.BlockSpec(memory_space=pltpu.MemorySpace.SMEM),  # b3 scalar (f32)
    ]
    # Lane-dense output: (1, b_pad) with a (1, bb) block per grid step.
    out_specs = pl.BlockSpec((1, bb), lambda i: (0, i))

    out = pl.pallas_call(
        _critic_kernel,
        out_shape=jax.ShapeDtypeStruct((1, b_pad), jnp.float32),
        grid_spec=pltpu.PrefetchScalarGridSpec(
            num_scalar_prefetch=0,
            grid=grid,
            in_specs=in_specs,
            out_specs=out_specs,
        ),
        compiler_params=pltpu.CompilerParams(
            dimension_semantics=("parallel",)),
    )(state, action, w1s, w1a, b1, w2, b2, w3_row, b3)

    # Layout plumbing back to the PyTorch (B, 1) shape.
    return out[0, :B][:, None]


def init_critic_params(key, state_dim, action_dim, hidden=256):
    """Deterministic synthetic init (Kaiming-uniform-ish), (in, out) layout.

    Weights used on the MXU are stored bf16 (W1 split into state/action
    halves); biases and the layer-3 row stay f32.
    """
    k1, k2, k3, k4, k5, k6 = jax.random.split(key, 6)
    in1 = state_dim + action_dim

    def u(k, shape, fan_in):
        bound = 1.0 / jnp.sqrt(fan_in)
        return jax.random.uniform(k, shape, jnp.float32, -bound, bound)

    w1 = u(k1, (in1, hidden), in1).astype(jnp.bfloat16)
    w1s = w1[:state_dim]
    w1a = w1[state_dim:]
    b1 = u(k2, (1, hidden), in1)
    w2 = u(k3, (hidden, hidden), hidden).astype(jnp.bfloat16)
    b2 = u(k4, (1, hidden), hidden)
    w3_row = u(k5, (1, hidden), hidden)          # layer-3 weight as a lane row
    b3 = u(k6, (1, 1), hidden)
    return (w1s, w1a, b1, w2, b2, w3_row, b3)


def critic_reference(state, action, params):
    """Pure-JAX reference using the same bf16-operand / f32-accumulate path."""
    w1s, w1a, b1, w2, b2, w3_row, b3 = params
    h1 = (jnp.dot(state.astype(jnp.bfloat16), w1s,
                  preferred_element_type=jnp.float32)
          + jnp.dot(action.astype(jnp.bfloat16), w1a,
                    preferred_element_type=jnp.float32))
    h1 = jnp.maximum(h1 + b1, 0.0)
    h2 = jnp.dot(h1.astype(jnp.bfloat16), w2,
                 preferred_element_type=jnp.float32)
    h2 = jnp.maximum(h2 + b2, 0.0)
    return jnp.sum(h2 * w3_row, axis=-1, keepdims=True) + b3


def critic_reference_f32(state, action, params):
    """Full-f32 reference (informational accuracy report only)."""
    w1s, w1a, b1, w2, b2, w3_row, b3 = params
    x = jnp.concatenate([state, action], axis=-1)
    w1 = jnp.concatenate([w1s, w1a], axis=0).astype(jnp.float32)
    h1 = jnp.maximum(x @ w1 + b1, 0.0)
    h2 = jnp.maximum(h1 @ w2.astype(jnp.float32) + b2, 0.0)
    return jnp.sum(h2 * w3_row, axis=-1, keepdims=True) + b3


if __name__ == "__main__":
    state_dim, action_dim = 16, 8
    key = jax.random.PRNGKey(0)
    k_s, k_a, k_p = jax.random.split(key, 3)
    params = init_critic_params(k_p, state_dim, action_dim, hidden=256)

    # Small case (B=8): single grid step (tile clamped to 128 rows, padded).
    B = 8
    state = jax.random.normal(k_s, (B, state_dim), jnp.float32)
    action = jax.random.normal(k_a, (B, action_dim), jnp.float32)
    q = critic_forward(state, action, params)
    jax.block_until_ready(q)
    assert q.shape == (B, 1), q.shape
    q_ref = critic_reference(state, action, params)
    assert jnp.allclose(q, q_ref, atol=2e-3, rtol=2e-3), (
        float(jnp.max(jnp.abs(q - q_ref))))

    # Ragged / multi-step case (B=200): exercises batch padding and a 2-step
    # "parallel" grid (shards across both TensorCores on v7x).
    B2 = 200
    state2 = jax.random.normal(jax.random.PRNGKey(1), (B2, state_dim),
                               jnp.float32)
    action2 = jax.random.normal(jax.random.PRNGKey(2), (B2, action_dim),
                                jnp.float32)
    q2 = critic_forward(state2, action2, params)
    jax.block_until_ready(q2)
    assert q2.shape == (B2, 1), q2.shape
    q2_ref = critic_reference(state2, action2, params)
    assert jnp.allclose(q2, q2_ref, atol=2e-3, rtol=2e-3), (
        float(jnp.max(jnp.abs(q2 - q2_ref))))

    # Informational: bf16-matmul kernel vs full-f32 math (expected ~1e-2).
    # TODO(synk): bf16 MXU operands deviate ~1e-2 from a full-f32 PyTorch
    # Critic; acceptable for TD3 but stated here for kernel consumers.
    _ = float(jnp.max(jnp.abs(q2 - critic_reference_f32(state2, action2,
                                                        params))))

    print("KERNEL_OK")
</pallas_src>

<mosaic_0001>
module attributes {stable_mosaic.version = 11 : i64} {
  func.func @_critic_kernel(%arg0: i32, %arg1: memref<128x16xf32, #tpu.memory_space<vmem>>, %arg2: memref<128x8xf32, #tpu.memory_space<vmem>>, %arg3: memref<16x256xbf16, #tpu.memory_space<vmem>>, %arg4: memref<8x256xbf16, #tpu.memory_space<vmem>>, %arg5: memref<1x256xf32, #tpu.memory_space<vmem>>, %arg6: memref<256x256xbf16, #tpu.memory_space<vmem>>, %arg7: memref<1x256xf32, #tpu.memory_space<vmem>>, %arg8: memref<1x256xf32, #tpu.memory_space<vmem>>, %arg9: memref<1x1xf32, #tpu.memory_space<smem>>, %arg10: memref<1x128xf32, #tpu.memory_space<vmem>>) attributes {dimension_semantics = [#tpu.dimension_semantics<parallel>], iteration_bounds = array<i64: 1>, scalar_prefetch = 0 : i64, scratch_operands = 0 : i64, tpu.core_type = #tpu.core_type<tc>, window_params = [{transform_indices = @transform_0, window_bounds = array<i64: 128, 16>}, {transform_indices = @transform_1, window_bounds = array<i64: 128, 8>}, {pipeline_mode = #tpu.pipeline_mode<synchronous>, transform_indices = @transform_2, window_bounds = array<i64: 16, 256>}, {pipeline_mode = #tpu.pipeline_mode<synchronous>, transform_indices = @transform_3, window_bounds = array<i64: 8, 256>}, {pipeline_mode = #tpu.pipeline_mode<synchronous>, transform_indices = @transform_4, window_bounds = array<i64: 1, 256>}, {pipeline_mode = #tpu.pipeline_mode<synchronous>, transform_indices = @transform_5, window_bounds = array<i64: 256, 256>}, {pipeline_mode = #tpu.pipeline_mode<synchronous>, transform_indices = @transform_6, window_bounds = array<i64: 1, 256>}, {pipeline_mode = #tpu.pipeline_mode<synchronous>, transform_indices = @transform_7, window_bounds = array<i64: 1, 256>}, {transform_indices = @transform_8, window_bounds = array<i64: 1, 1>}, {transform_indices = @transform_9, window_bounds = array<i64: 1, 128>}]} {
    %c0 = arith.constant 0 : index
    %c0_0 = arith.constant 0 : index
    %0 = vector.load %arg1[%c0, %c0_0] : memref<128x16xf32, #tpu.memory_space<vmem>>, vector<128x16xf32>
    %1 = arith.truncf %0 : vector<128x16xf32> to vector<128x16xbf16>
    %c0_1 = arith.constant 0 : index
    %c0_2 = arith.constant 0 : index
    %2 = vector.load %arg2[%c0_1, %c0_2] : memref<128x8xf32, #tpu.memory_space<vmem>>, vector<128x8xf32>
    %3 = arith.truncf %2 : vector<128x8xf32> to vector<128x8xbf16>
    %c0_3 = arith.constant 0 : index
    %c0_4 = arith.constant 0 : index
    %4 = vector.load %arg3[%c0_3, %c0_4] : memref<16x256xbf16, #tpu.memory_space<vmem>>, vector<16x256xbf16>
    %cst = arith.constant dense<0.000000e+00> : vector<128x256xf32>
    %5 = tpu.matmul %1, %4, %cst {dimension_numbers = #tpu.dot_dimension_numbers<[1], [0], [0], [1], [0, 0, 1, 1], [], []>} : vector<128x16xbf16>, vector<16x256xbf16>, vector<128x256xf32> -> vector<128x256xf32>
    %c0_5 = arith.constant 0 : index
    %c0_6 = arith.constant 0 : index
    %6 = vector.load %arg4[%c0_5, %c0_6] : memref<8x256xbf16, #tpu.memory_space<vmem>>, vector<8x256xbf16>
    %cst_7 = arith.constant dense<0.000000e+00> : vector<128x256xf32>
    %7 = tpu.matmul %3, %6, %cst_7 {dimension_numbers = #tpu.dot_dimension_numbers<[1], [0], [0], [1], [0, 0, 1, 1], [], []>} : vector<128x8xbf16>, vector<8x256xbf16>, vector<128x256xf32> -> vector<128x256xf32>
    %8 = arith.addf %5, %7 : vector<128x256xf32>
    %c0_8 = arith.constant 0 : index
    %c0_9 = arith.constant 0 : index
    %9 = vector.load %arg5[%c0_8, %c0_9] : memref<1x256xf32, #tpu.memory_space<vmem>>, vector<1x256xf32>
    %10 = vector.broadcast %9 : vector<1x256xf32> to vector<128x256xf32>
    %11 = arith.addf %8, %10 : vector<128x256xf32>
    %cst_10 = arith.constant 0.000000e+00 : f32
    %12 = vector.broadcast %cst_10 : f32 to vector<128x256xf32>
    %13 = arith.maximumf %11, %12 : vector<128x256xf32>
    %14 = arith.truncf %13 : vector<128x256xf32> to vector<128x256xbf16>
    %c0_11 = arith.constant 0 : index
    %c0_12 = arith.constant 0 : index
    %15 = vector.load %arg6[%c0_11, %c0_12] : memref<256x256xbf16, #tpu.memory_space<vmem>>, vector<256x256xbf16>
    %cst_13 = arith.constant dense<0.000000e+00> : vector<128x256xf32>
    %16 = tpu.matmul %14, %15, %cst_13 {dimension_numbers = #tpu.dot_dimension_numbers<[1], [0], [0], [1], [0, 0, 1, 1], [], []>} : vector<128x256xbf16>, vector<256x256xbf16>, vector<128x256xf32> -> vector<128x256xf32>
    %c0_14 = arith.constant 0 : index
    %c0_15 = arith.constant 0 : index
    %17 = vector.load %arg7[%c0_14, %c0_15] : memref<1x256xf32, #tpu.memory_space<vmem>>, vector<1x256xf32>
    %18 = vector.broadcast %17 : vector<1x256xf32> to vector<128x256xf32>
    %19 = arith.addf %16, %18 : vector<128x256xf32>
    %cst_16 = arith.constant 0.000000e+00 : f32
    %20 = vector.broadcast %cst_16 : f32 to vector<128x256xf32>
    %21 = arith.maximumf %19, %20 : vector<128x256xf32>
    %c0_17 = arith.constant 0 : index
    %c0_18 = arith.constant 0 : index
    %22 = vector.load %arg8[%c0_17, %c0_18] : memref<1x256xf32, #tpu.memory_space<vmem>>, vector<1x256xf32>
    %cst_19 = arith.constant dense<0.000000e+00> : vector<1x128xf32>
    %23 = tpu.matmul %22, %21, %cst_19 {dimension_numbers = #tpu.dot_dimension_numbers<[1], [1], [0], [0], [0, 0, 1, 0], [], []>} : vector<1x256xf32>, vector<128x256xf32>, vector<1x128xf32> -> vector<1x128xf32>
    %c0_20 = arith.constant 0 : index
    %c0_21 = arith.constant 0 : index
    %24 = memref.load %arg9[%c0_20, %c0_21] : memref<1x1xf32, #tpu.memory_space<smem>>
    %25 = vector.broadcast %24 : f32 to vector<1x128xf32>
    %26 = arith.addf %23, %25 : vector<1x128xf32>
    %c0_22 = arith.constant 0 : index
    %c0_23 = arith.constant 0 : index
    %27 = vector.load %arg10[%c0_22, %c0_23] : memref<1x128xf32, #tpu.memory_space<vmem>>, vector<1x128xf32>
    tpu.vector_store %arg10[%c0_22, %c0_23], %26 {strides = array<i32>} : memref<1x128xf32, #tpu.memory_space<vmem>>, vector<1x128xf32>,
    return
  }
  func.func @transform_0(%arg0: i32) -> (i32, i32) {
    %c0_i32 = arith.constant 0 : i32
    %c0_i32_0 = arith.constant 0 : i32
    return %arg0, %c0_i32 : i32, i32
  }
  func.func @transform_1(%arg0: i32) -> (i32, i32) {
    %c0_i32 = arith.constant 0 : i32
    %c0_i32_0 = arith.constant 0 : i32
    return %arg0, %c0_i32 : i32, i32
  }
  func.func @transform_2(%arg0: i32) -> (i32, i32) {
    %c0_i32 = arith.constant 0 : i32
    %c0_i32_0 = arith.constant 0 : i32
    %c0_i32_1 = arith.constant 0 : i32
    return %c0_i32, %c0_i32_0 : i32, i32
  }
  func.func @transform_3(%arg0: i32) -> (i32, i32) {
    %c0_i32 = arith.constant 0 : i32
    %c0_i32_0 = arith.constant 0 : i32
    %c0_i32_1 = arith.constant 0 : i32
    return %c0_i32, %c0_i32_0 : i32, i32
  }
  func.func @transform_4(%arg0: i32) -> (i32, i32) {
    %c0_i32 = arith.constant 0 : i32
    %c0_i32_0 = arith.constant 0 : i32
    %c0_i32_1 = arith.constant 0 : i32
    return %c0_i32, %c0_i32_0 : i32, i32
  }
  func.func @transform_5(%arg0: i32) -> (i32, i32) {
    %c0_i32 = arith.constant 0 : i32
    %c0_i32_0 = arith.constant 0 : i32
    %c0_i32_1 = arith.constant 0 : i32
    return %c0_i32, %c0_i32_0 : i32, i32
  }
  func.func @transform_6(%arg0: i32) -> (i32, i32) {
    %c0_i32 = arith.constant 0 : i32
    %c0_i32_0 = arith.constant 0 : i32
    %c0_i32_1 = arith.constant 0 : i32
    return %c0_i32, %c0_i32_0 : i32, i32
  }
  func.func @transform_7(%arg0: i32) -> (i32, i32) {
    %c0_i32 = arith.constant 0 : i32
    %c0_i32_0 = arith.constant 0 : i32
    %c0_i32_1 = arith.constant 0 : i32
    return %c0_i32, %c0_i32_0 : i32, i32
  }
  func.func @transform_8(%arg0: i32) -> (i32, i32) {
    %c0_i32 = arith.constant 0 : i32
    %c0_i32_0 = arith.constant 0 : i32
    %c0_i32_1 = arith.constant 0 : i32
    return %c0_i32, %c0_i32_0 : i32, i32
  }
  func.func @transform_9(%arg0: i32) -> (i32, i32) {
    %c0_i32 = arith.constant 0 : i32
    %c0_i32_0 = arith.constant 0 : i32
    return %c0_i32, %arg0 : i32, i32
  }
}

</mosaic_0001>

<llo_original>
// kernel: critic_forward.1
$region0: #{critic_forward.1}
  #allocation0 [shape = 'u32[]', space=smem, size = 0x4, offset = 0x4, fixed_abs, tag = 'smem constant byte address 0x4 - core index']
  #allocation1 [shape = 'u32[144,128]{1,0:T(1,128)}', space=vmem, size = 0x12000, scoped, tag = 'internal scratch']
  #allocation2 [shape = 'f32[1,1]{1,0:T(1,128)S(6)}', space=smem, size = 0x200, scoped, tag = 'scoped memory for critic_forward.1']
  %s0 = inlined_call_operand.vmem [shape: f32[128,16], index: 0, kind: input, shape index: {}]
  %s1 = inlined_call_operand.vmem [shape: f32[128,8], index: 1, kind: input, shape index: {}]
  %s2 = inlined_call_operand.vmem [shape: bf16[16,256], index: 2, kind: input, shape index: {}]
  %s3 = inlined_call_operand.vmem [shape: bf16[8,256], index: 3, kind: input, shape index: {}]
  %s4 = inlined_call_operand.vmem [shape: f32[1,256], index: 4, kind: input, shape index: {}]
  %s5 = inlined_call_operand.vmem [shape: bf16[256,256], index: 5, kind: input, shape index: {}]
  %s6 = inlined_call_operand.vmem [shape: f32[1,256], index: 6, kind: input, shape index: {}]
  %s7 = inlined_call_operand.vmem [shape: f32[1,256], index: 7, kind: input, shape index: {}]
  %s8 = inlined_call_operand.<no memory space> [shape: f32[1,1], index: 8, kind: input, shape index: {}]
  %s9 = inlined_call_operand.vmem [shape: f32[1,128], index: 9, kind: output, shape index: {}]
  %s10 = sld [smem:[#allocation0]]
  $region46: #{critic_forward.1} parent=0
    _
  %s12 = ssub.s32 1, %s10
  %s13 = scalar_select 0, %s12, %s10
  %14 = sst [smem:[#allocation2]] %s8
  // Predicated region
  $region2: #{critic_forward.1} parent=0 // pred_check
    _
  $region3: #{critic_forward.1} parent=0 // pred_check_branch
    %16 = sbr.rel (0) target = $region5
  $region4: #{critic_forward.1} parent=0 // pred_region
    _
  $region5: #{critic_forward.1} parent=0 // pred_fallthru
    _
  // Predicated region
  $region6: #{critic_forward.1} parent=0 // pred_check
    _
  $region7: #{critic_forward.1} parent=0 // pred_check_branch
    %18 = sbr.rel (0) target = $region9
  $region8: #{critic_forward.1} parent=0 // pred_region
    _
  $region9: #{critic_forward.1} parent=0 // pred_fallthru
    _
  // Predicated region
  $region10: #{critic_forward.1} parent=0 // pred_check
    _
  $region11: #{critic_forward.1} parent=0 // pred_check_branch
    %20 = sbr.rel (0) target = $region13
  $region12: #{critic_forward.1} parent=0 // pred_region
    _
  $region13: #{critic_forward.1} parent=0 // pred_fallthru
    _
  // Predicated region
  $region14: #{critic_forward.1} parent=0 // pred_check
    _
  $region15: #{critic_forward.1} parent=0 // pred_check_branch
    %22 = sbr.rel (0) target = $region17
  $region16: #{critic_forward.1} parent=0 // pred_region
    _
  $region17: #{critic_forward.1} parent=0 // pred_fallthru
    _
  // Predicated region
  $region18: #{critic_forward.1} parent=0 // pred_check
    _
  $region19: #{critic_forward.1} parent=0 // pred_check_branch
    %24 = sbr.rel (0) target = $region21
  $region20: #{critic_forward.1} parent=0 // pred_region
    _
  $region21: #{critic_forward.1} parent=0 // pred_fallthru
    _
  // Predicated region
  $region22: #{critic_forward.1} parent=0 // pred_check
    _
  $region23: #{critic_forward.1} parent=0 // pred_check_branch
    %26 = sbr.rel (0) target = $region25
  $region24: #{critic_forward.1} parent=0 // pred_region
    _
  $region25: #{critic_forward.1} parent=0 // pred_fallthru
    _
  // Predicated region
  $region26: #{critic_forward.1} parent=0 // pred_check
    _
  $region27: #{critic_forward.1} parent=0 // pred_check_branch
    %28 = sbr.rel (0) target = $region29
  $region28: #{critic_forward.1} parent=0 // pred_region
    _
  $region29: #{critic_forward.1} parent=0 // pred_fallthru
    _
  // Predicated region
  $region30: #{critic_forward.1} parent=0 // pred_check
    _
  $region31: #{critic_forward.1} parent=0 // pred_check_branch
    %30 = sbr.rel (0) target = $region33
  $region32: #{critic_forward.1} parent=0 // pred_region
    _
  $region33: #{critic_forward.1} parent=0 // pred_fallthru
    _
  // Predicated region
  $region34: #{critic_forward.1} parent=0 // pred_check
    _
  $region35: #{critic_forward.1} parent=0 // pred_check_branch
    %32 = sbr.rel (0) target = $region37
  $region36: #{critic_forward.1} parent=0 // pred_region
    _
  $region37: #{critic_forward.1} parent=0 // pred_fallthru
    _
  %v34 = vld [vmem:[%s0] sm:$0xff]
  %v35 = vld [vmem:[%s0 + $0x8] sm:$0xff]
  %v36 = vld [vmem:[%s0 + $0x10] sm:$0xff]
  %v37 = vld [vmem:[%s0 + $0x18] sm:$0xff]
  %v38 = vld [vmem:[%s0 + $0x20] sm:$0xff]
  %v39 = vld [vmem:[%s0 + $0x28] sm:$0xff]
  %v40 = vld [vmem:[%s0 + $0x30] sm:$0xff]
  %v41 = vld [vmem:[%s0 + $0x38] sm:$0xff]
  %v42 = vld [vmem:[%s0 + $0x40] sm:$0xff]
  %v43 = vld [vmem:[%s0 + $0x48] sm:$0xff]
  %v44 = vld [vmem:[%s0 + $0x50] sm:$0xff]
  %v45 = vld [vmem:[%s0 + $0x58] sm:$0xff]
  %v46 = vld [vmem:[%s0 + $0x60] sm:$0xff]
  %v47 = vld [vmem:[%s0 + $0x68] sm:$0xff]
  %v48 = vld [vmem:[%s0 + $0x70] sm:$0xff]
  %v49 = vld [vmem:[%s0 + $0x78] sm:$0xff]
  %v50 = vpack.c.bf16 %v35, %v34
  %v51 = vpack.c.bf16 %v37, %v36
  %v52 = vpack.c.bf16 %v39, %v38
  %v53 = vpack.c.bf16 %v41, %v40
  %v54 = vpack.c.bf16 %v43, %v42
  %v55 = vpack.c.bf16 %v45, %v44
  %v56 = vpack.c.bf16 %v47, %v46
  %v57 = vpack.c.bf16 %v49, %v48
  %v58 = vld [vmem:[%s1] sm:$0xff]
  %v59 = vld [vmem:[%s1 + $0x8] sm:$0xff]
  %v60 = vld [vmem:[%s1 + $0x10] sm:$0xff]
  %v61 = vld [vmem:[%s1 + $0x18] sm:$0xff]
  %v62 = vld [vmem:[%s1 + $0x20] sm:$0xff]
  %v63 = vld [vmem:[%s1 + $0x28] sm:$0xff]
  %v64 = vld [vmem:[%s1 + $0x30] sm:$0xff]
  %v65 = vld [vmem:[%s1 + $0x38] sm:$0xff]
  %v66 = vld [vmem:[%s1 + $0x40] sm:$0xff]
  %v67 = vld [vmem:[%s1 + $0x48] sm:$0xff]
  %v68 = vld [vmem:[%s1 + $0x50] sm:$0xff]
  %v69 = vld [vmem:[%s1 + $0x58] sm:$0xff]
  %v70 = vld [vmem:[%s1 + $0x60] sm:$0xff]
  %v71 = vld [vmem:[%s1 + $0x68] sm:$0xff]
  %v72 = vld [vmem:[%s1 + $0x70] sm:$0xff]
  %v73 = vld [vmem:[%s1 + $0x78] sm:$0xff]
  %v74 = vpack.c.bf16 %v59, %v58
  %v75 = vpack.c.bf16 %v61, %v60
  %v76 = vpack.c.bf16 %v63, %v62
  %v77 = vpack.c.bf16 %v65, %v64
  %v78 = vpack.c.bf16 %v67, %v66
  %v79 = vpack.c.bf16 %v69, %v68
  %v80 = vpack.c.bf16 %v71, %v70
  %v81 = vpack.c.bf16 %v73, %v72
  %v82 = vld [vmem:[%s2] sm:$0xff]
  %v83 = vld [vmem:[%s2 + $0x8] sm:$0xff]
  %v84 = vld [vmem:[%s3] sm:$0xff]
  %v86 = vunpack.c.l.b16 %v84
  %v87 = vunpack.c.h.b16 %v84
  %v88 = vpack.c.b16 %v86, %v86
  %v89 = vpack.c.b16 %v87, %v87
  %vm90 = vcmask 64512
  %v92 = vsel %vm90, %v74, 0
  %v95 = vsel %vm90, %v75, 0
  %v98 = vsel %vm90, %v76, 0
  %v101 = vsel %vm90, %v77, 0
  %v104 = vsel %vm90, %v78, 0
  %v107 = vsel %vm90, %v79, 0
  %v110 = vsel %vm90, %v80, 0
  %v113 = vsel %vm90, %v81, 0
  %vm115 = vcmask 1043456
  %v117 = vsel %vm115, %v88, 0
  %v120 = vsel %vm115, %v89, 0
  %122 = vmatprep.subr.bf16.mxu0 %v120
  %123 = vmatpush1.bf16.msra.mxu0 %v117
  %124 = vmatprep.subr.bf16.mxu0 0
  %125 = vmatpush1.bf16.msra.mxu0 0
  %126 = vmatprep.subr.bf16.mxu0 0
  %127 = vmatpush1.bf16.msra.mxu0 0
  %128 = vmatprep.subr.bf16.mxu0 0
  %129 = vmatpush1.bf16.msra.mxu0 0
  %130 = vmatprep.subr.bf16.mxu0 0
  %131 = vmatpush1.bf16.msra.mxu0 0
  %132 = vmatprep.subr.bf16.mxu0 0
  %133 = vmatpush1.bf16.msra.mxu0 0
  %134 = vmatprep.subr.bf16.mxu0 0
  %135 = vmatpush1.bf16.msra.mxu0 0
  %136 = vmatprep.subr.bf16.mxu0 0
  %137 = vmatpush1.bf16.msra.mxu0 0
  %138 = vmatprep.subr.bf16.mxu0 0
  %139 = vmatpush1.bf16.msra.mxu0 0
  %140 = vmatprep.subr.bf16.mxu0 0
  %141 = vmatpush1.bf16.msra.mxu0 0
  %142 = vmatprep.subr.bf16.mxu0 0
  %143 = vmatpush1.bf16.msra.mxu0 0
  %144 = vmatprep.subr.bf16.mxu0 0
  %145 = vmatpush1.bf16.msra.mxu0 0
  %146 = vmatprep.subr.bf16.mxu0 0
  %147 = vmatpush1.bf16.msra.mxu0 0
  %148 = vmatprep.subr.bf16.mxu0 0
  %149 = vmatpush1.bf16.msra.mxu0 0
  %150 = vmatprep.subr.bf16.mxu0 0
  %151 = vmatpush1.bf16.msra.mxu0 0
  %152 = vmatprep.subr.bf16.mxu0 0
  %153 = vmatpush1.bf16.msra.mxu0 0
  %154 = vmatprep.mubr.bf16.mxu0 0
  %155 = vmatmul.mubr.bf16.gmra.mrb[0].mxu0 %v92
  %v156 = vpop.f32.mrb[0].mxu0
  %v157 = vadd.f32 0.0, %v156
  %v158 = vpop.f32.mrb[0].mxu0
  %v159 = vadd.f32 0.0, %v158
  %v160 = vpop.f32.mrb[0].mxu0
  %v161 = vadd.f32 0.0, %v160
  %v162 = vpop.f32.mrb[0].mxu0
  %v163 = vadd.f32 0.0, %v162
  %164 = vmatprep.mubr.bf16.mxu0 0
  %165 = vmatmul.mubr.bf16.gmra.mrb[0].mxu0 %v95
  %v166 = vpop.f32.mrb[0].mxu0
  %v167 = vadd.f32 0.0, %v166
  %v168 = vpop.f32.mrb[0].mxu0
  %v169 = vadd.f32 0.0, %v168
  %v170 = vpop.f32.mrb[0].mxu0
  %v171 = vadd.f32 0.0, %v170
  %v172 = vpop.f32.mrb[0].mxu0
  %v173 = vadd.f32 0.0, %v172
  %174 = vmatprep.mubr.bf16.mxu0 0
  %175 = vmatmul.mubr.bf16.gmra.mrb[0].mxu0 %v98
  %v176 = vpop.f32.mrb[0].mxu0
  %v177 = vadd.f32 0.0, %v176
  %v178 = vpop.f32.mrb[0].mxu0
  %v179 = vadd.f32 0.0, %v178
  %v180 = vpop.f32.mrb[0].mxu0
  %v181 = vadd.f32 0.0, %v180
  %v182 = vpop.f32.mrb[0].mxu0
  %v183 = vadd.f32 0.0, %v182
  %184 = vmatprep.mubr.bf16.mxu0 0
  %185 = vmatmul.mubr.bf16.gmra.mrb[0].mxu0 %v101
  %v186 = vpop.f32.mrb[0].mxu0
  %v187 = vadd.f32 0.0, %v186
  %v188 = vpop.f32.mrb[0].mxu0
  %v189 = vadd.f32 0.0, %v188
  %v190 = vpop.f32.mrb[0].mxu0
  %v191 = vadd.f32 0.0, %v190
  %v192 = vpop.f32.mrb[0].mxu0
  %v193 = vadd.f32 0.0, %v192
  %194 = vmatprep.mubr.bf16.mxu0 0
  %195 = vmatmul.mubr.bf16.gmra.mrb[0].mxu0 %v104
  %v196 = vpop.f32.mrb[0].mxu0
  %v197 = vadd.f32 0.0, %v196
  %v198 = vpop.f32.mrb[0].mxu0
  %v199 = vadd.f32 0.0, %v198
  %v200 = vpop.f32.mrb[0].mxu0
  %v201 = vadd.f32 0.0, %v200
  %v202 = vpop.f32.mrb[0].mxu0
  %v203 = vadd.f32 0.0, %v202
  %204 = vmatprep.mubr.bf16.mxu0 0
  %205 = vmatmul.mubr.bf16.gmra.mrb[0].mxu0 %v107
  %v206 = vpop.f32.mrb[0].mxu0
  %v207 = vadd.f32 0.0, %v206
  %v208 = vpop.f32.mrb[0].mxu0
  %v209 = vadd.f32 0.0, %v208
  %v210 = vpop.f32.mrb[0].mxu0
  %v211 = vadd.f32 0.0, %v210
  %v212 = vpop.f32.mrb[0].mxu0
  %v213 = vadd.f32 0.0, %v212
  %214 = vmatprep.mubr.bf16.mxu0 0
  %215 = vmatmul.mubr.bf16.gmra.mrb[0].mxu0 %v110
  %v216 = vpop.f32.mrb[0].mxu0
  %v217 = vadd.f32 0.0, %v216
  %v218 = vpop.f32.mrb[0].mxu0
  %v219 = vadd.f32 0.0, %v218
  %v220 = vpop.f32.mrb[0].mxu0
  %v221 = vadd.f32 0.0, %v220
  %v222 = vpop.f32.mrb[0].mxu0
  %v223 = vadd.f32 0.0, %v222
  %224 = vmatprep.mubr.bf16.mxu0 0
  %225 = vmatmul.mubr.bf16.gmra.mrb[0].mxu0 %v113
  %v226 = vpop.f32.mrb[0].mxu0
  %v227 = vadd.f32 0.0, %v226
  %v228 = vpop.f32.mrb[0].mxu0
  %v229 = vadd.f32 0.0, %v228
  %v230 = vpop.f32.mrb[0].mxu0
  %v231 = vadd.f32 0.0, %v230
  %v232 = vpop.f32.mrb[0].mxu0
  %v233 = vadd.f32 0.0, %v232
  %234 = vdwg.mxu0
  %v237 = vunpack.c.l.b16 %v82
  %v238 = vunpack.c.h.b16 %v82
  %v239 = vunpack.c.l.b16 %v83
  %v240 = vunpack.c.h.b16 %v83
  %v241 = vpack.c.b16 %v239, %v237
  %v242 = vpack.c.b16 %v240, %v238
  %vm245 = vcmask 130048
  %v247 = vsel %vm245, %v50, 0
  %v250 = vsel %vm245, %v51, 0
  %v253 = vsel %vm245, %v52, 0
  %v256 = vsel %vm245, %v53, 0
  %v259 = vsel %vm245, %v54, 0
  %v262 = vsel %vm245, %v55, 0
  %v265 = vsel %vm245, %v56, 0
  %v268 = vsel %vm245, %v57, 0
  %270 = vmatprep.subr.bf16.mxu0 %v242
  %271 = vmatpush1.bf16.msra.mxu0 %v241
  %272 = vmatprep.subr.bf16.mxu0 0
  %273 = vmatpush1.bf16.msra.mxu0 0
  %274 = vmatprep.subr.bf16.mxu0 0
  %275 = vmatpush1.bf16.msra.mxu0 0
  %276 = vmatprep.subr.bf16.mxu0 0
  %277 = vmatpush1.bf16.msra.mxu0 0
  %278 = vmatprep.subr.bf16.mxu0 0
  %279 = vmatpush1.bf16.msra.mxu0 0
  %280 = vmatprep.subr.bf16.mxu0 0
  %281 = vmatpush1.bf16.msra.mxu0 0
  %282 = vmatprep.subr.bf16.mxu0 0
  %283 = vmatpush1.bf16.msra.mxu0 0
  %284 = vmatprep.subr.bf16.mxu0 0
  %285 = vmatpush1.bf16.msra.mxu0 0
  %286 = vmatprep.subr.bf16.mxu0 0
  %287 = vmatpush1.bf16.msra.mxu0 0
  %288 = vmatprep.subr.bf16.mxu0 0
  %289 = vmatpush1.bf16.msra.mxu0 0
  %290 = vmatprep.subr.bf16.mxu0 0
  %291 = vmatpush1.bf16.msra.mxu0 0
  %292 = vmatprep.subr.bf16.mxu0 0
  %293 = vmatpush1.bf16.msra.mxu0 0
  %294 = vmatprep.subr.bf16.mxu0 0
  %295 = vmatpush1.bf16.msra.mxu0 0
  %296 = vmatprep.subr.bf16.mxu0 0
  %297 = vmatpush1.bf16.msra.mxu0 0
  %298 = vmatprep.subr.bf16.mxu0 0
  %299 = vmatpush1.bf16.msra.mxu0 0
  %300 = vmatprep.subr.bf16.mxu0 0
  %301 = vmatpush1.bf16.msra.mxu0 0
  %302 = vmatprep.mubr.bf16.mxu0 0
  %303 = vmatmul.mubr.bf16.gmra.mrb[0].mxu0 %v247
  %v304 = vpop.f32.mrb[0].mxu0
  %v305 = vadd.f32 %v157, %v304
  %v306 = vpop.f32.mrb[0].mxu0
  %v307 = vadd.f32 %v159, %v306
  %v308 = vpop.f32.mrb[0].mxu0
  %v309 = vadd.f32 %v161, %v308
  %v310 = vpop.f32.mrb[0].mxu0
  %v311 = vadd.f32 %v163, %v310
  %312 = vmatprep.mubr.bf16.mxu0 0
  %313 = vmatmul.mubr.bf16.gmra.mrb[0].mxu0 %v250
  %v314 = vpop.f32.mrb[0].mxu0
  %v315 = vadd.f32 %v167, %v314
  %v316 = vpop.f32.mrb[0].mxu0
  %v317 = vadd.f32 %v169, %v316
  %v318 = vpop.f32.mrb[0].mxu0
  %v319 = vadd.f32 %v171, %v318
  %v320 = vpop.f32.mrb[0].mxu0
  %v321 = vadd.f32 %v173, %v320
  %322 = vmatprep.mubr.bf16.mxu0 0
  %323 = vmatmul.mubr.bf16.gmra.mrb[0].mxu0 %v253
  %v324 = vpop.f32.mrb[0].mxu0
  %v325 = vadd.f32 %v177, %v324
  %v326 = vpop.f32.mrb[0].mxu0
  %v327 = vadd.f32 %v179, %v326
  %v328 = vpop.f32.mrb[0].mxu0
  %v329 = vadd.f32 %v181, %v328
  %v330 = vpop.f32.mrb[0].mxu0
  %v331 = vadd.f32 %v183, %v330
  %332 = vmatprep.mubr.bf16.mxu0 0
  %333 = vmatmul.mubr.bf16.gmra.mrb[0].mxu0 %v256
  %v334 = vpop.f32.mrb[0].mxu0
  %v335 = vadd.f32 %v187, %v334
  %v336 = vpop.f32.mrb[0].mxu0
  %v337 = vadd.f32 %v189, %v336
  %v338 = vpop.f32.mrb[0].mxu0
  %v339 = vadd.f32 %v191, %v338
  %v340 = vpop.f32.mrb[0].mxu0
  %v341 = vadd.f32 %v193, %v340
  %342 = vmatprep.mubr.bf16.mxu0 0
  %343 = vmatmul.mubr.bf16.gmra.mrb[0].mxu0 %v259
  %v344 = vpop.f32.mrb[0].mxu0
  %v345 = vadd.f32 %v197, %v344
  %v346 = vpop.f32.mrb[0].mxu0
  %v347 = vadd.f32 %v199, %v346
  %v348 = vpop.f32.mrb[0].mxu0
  %v349 = vadd.f32 %v201, %v348
  %v350 = vpop.f32.mrb[0].mxu0
  %v351 = vadd.f32 %v203, %v350
  %352 = vmatprep.mubr.bf16.mxu0 0
  %353 = vmatmul.mubr.bf16.gmra.mrb[0].mxu0 %v262
  %v354 = vpop.f32.mrb[0].mxu0
  %v355 = vadd.f32 %v207, %v354
  %v356 = vpop.f32.mrb[0].mxu0
  %v357 = vadd.f32 %v209, %v356
  %v358 = vpop.f32.mrb[0].mxu0
  %v359 = vadd.f32 %v211, %v358
  %v360 = vpop.f32.mrb[0].mxu0
  %v361 = vadd.f32 %v213, %v360
  %362 = vmatprep.mubr.bf16.mxu0 0
  %363 = vmatmul.mubr.bf16.gmra.mrb[0].mxu0 %v265
  %v364 = vpop.f32.mrb[0].mxu0
  %v365 = vadd.f32 %v217, %v364
  %v366 = vpop.f32.mrb[0].mxu0
  %v367 = vadd.f32 %v219, %v366
  %v368 = vpop.f32.mrb[0].mxu0
  %v369 = vadd.f32 %v221, %v368
  %v370 = vpop.f32.mrb[0].mxu0
  %v371 = vadd.f32 %v223, %v370
  %372 = vmatprep.mubr.bf16.mxu0 0
  %373 = vmatmul.mubr.bf16.gmra.mrb[0].mxu0 %v268
  %v374 = vpop.f32.mrb[0].mxu0
  %v375 = vadd.f32 %v227, %v374
  %v376 = vpop.f32.mrb[0].mxu0
  %v377 = vadd.f32 %v229, %v376
  %v378 = vpop.f32.mrb[0].mxu0
  %v379 = vadd.f32 %v231, %v378
  %v380 = vpop.f32.mrb[0].mxu0
  %v381 = vadd.f32 %v233, %v380
  %382 = vdwg.mxu0
  %v383 = vld [vmem:[%s4] sm:$0x3]
  %v385 = vlaneseq
  %v386 = vshrl.u32 %v385, 7
  %v387 = vsub.s32 0, %v386
  %v388 = vrot.slane %v383, %v387
  %v389 = vlaneseq
  %v390 = vshrl.u32 %v389, 7
  %v391 = vsub.s32 1, %v390
  %v392 = vrot.slane %v383, %v391
  %v395 = vadd.f32 %v305, %v388
  %v396 = vadd.f32 %v307, %v392
  %v397 = vadd.f32 %v309, %v388
  %v398 = vadd.f32 %v311, %v392
  %v399 = vadd.f32 %v315, %v388
  %v400 = vadd.f32 %v317, %v392
  %v401 = vadd.f32 %v319, %v388
  %v402 = vadd.f32 %v321, %v392
  %v403 = vadd.f32 %v325, %v388
  %v404 = vadd.f32 %v327, %v392
  %v405 = vadd.f32 %v329, %v388
  %v406 = vadd.f32 %v331, %v392
  %v407 = vadd.f32 %v335, %v388
  %v408 = vadd.f32 %v337, %v392
  %v409 = vadd.f32 %v339, %v388
  %v410 = vadd.f32 %v341, %v392
  %v411 = vadd.f32 %v345, %v388
  %v412 = vadd.f32 %v347, %v392
  %v413 = vadd.f32 %v349, %v388
  %v414 = vadd.f32 %v351, %v392
  %v415 = vadd.f32 %v355, %v388
  %v416 = vadd.f32 %v357, %v392
  %v417 = vadd.f32 %v359, %v388
  %v418 = vadd.f32 %v361, %v392
  %v419 = vadd.f32 %v365, %v388
  %v420 = vadd.f32 %v367, %v392
  %v421 = vadd.f32 %v369, %v388
  %v422 = vadd.f32 %v371, %v392
  %v423 = vadd.f32 %v375, %v388
  %v424 = vadd.f32 %v377, %v392
  %v425 = vadd.f32 %v379, %v388
  %v426 = vadd.f32 %v381, %v392
  %v427 = vmax.f32 %v395, 0.0
  %v428 = vmax.f32 %v396, 0.0
  %v429 = vmax.f32 %v397, 0.0
  %v430 = vmax.f32 %v398, 0.0
  %v431 = vmax.f32 %v399, 0.0
  %v432 = vmax.f32 %v400, 0.0
  %v433 = vmax.f32 %v401, 0.0
  %v434 = vmax.f32 %v402, 0.0
  %v435 = vmax.f32 %v403, 0.0
  %v436 = vmax.f32 %v404, 0.0
  %v437 = vmax.f32 %v405, 0.0
  %v438 = vmax.f32 %v406, 0.0
  %v439 = vmax.f32 %v407, 0.0
  %v440 = vmax.f32 %v408, 0.0
  %v441 = vmax.f32 %v409, 0.0
  %v442 = vmax.f32 %v410, 0.0
  %v443 = vmax.f32 %v411, 0.0
  %v444 = vmax.f32 %v412, 0.0
  %v445 = vmax.f32 %v413, 0.0
  %v446 = vmax.f32 %v414, 0.0
  %v447 = vmax.f32 %v415, 0.0
  %v448 = vmax.f32 %v416, 0.0
  %v449 = vmax.f32 %v417, 0.0
  %v450 = vmax.f32 %v418, 0.0
  %v451 = vmax.f32 %v419, 0.0
  %v452 = vmax.f32 %v420, 0.0
  %v453 = vmax.f32 %v421, 0.0
  %v454 = vmax.f32 %v422, 0.0
  %v455 = vmax.f32 %v423, 0.0
  %v456 = vmax.f32 %v424, 0.0
  %v457 = vmax.f32 %v425, 0.0
  %v458 = vmax.f32 %v426, 0.0
  %v459 = vpack.c.bf16 %v429, %v427
  %v460 = vpack.c.bf16 %v430, %v428
  %v461 = vpack.c.bf16 %v433, %v431
  %v462 = vpack.c.bf16 %v434, %v432
  %v463 = vpack.c.bf16 %v437, %v435
  %v464 = vpack.c.bf16 %v438, %v436
  %v465 = vpack.c.bf16 %v441, %v439
  %v466 = vpack.c.bf16 %v442, %v440
  %v467 = vpack.c.bf16 %v445, %v443
  %v468 = vpack.c.bf16 %v446, %v444
  %v469 = vpack.c.bf16 %v449, %v447
  %v470 = vpack.c.bf16 %v450, %v448
  %v471 = vpack.c.bf16 %v453, %v451
  %v472 = vpack.c.bf16 %v454, %v452
  %v473 = vpack.c.bf16 %v457, %v455
  %v474 = vpack.c.bf16 %v458, %v456
  %v475 = vld [vmem:[%s5] sm:$0xff]
  %v476 = vld [vmem:[%s5 + $0x8] sm:$0xff]
  %v477 = vld [vmem:[%s5 + $0x10] sm:$0xff]
  %v478 = vld [vmem:[%s5 + $0x18] sm:$0xff]
  %v479 = vld [vmem:[%s5 + $0x20] sm:$0xff]
  %v480 = vld [vmem:[%s5 + $0x28] sm:$0xff]
  %v481 = vld [vmem:[%s5 + $0x30] sm:$0xff]
  %v482 = vld [vmem:[%s5 + $0x38] sm:$0xff]
  %v483 = vld [vmem:[%s5 + $0x40] sm:$0xff]
  %v484 = vld [vmem:[%s5 + $0x48] sm:$0xff]
  %v485 = vld [vmem:[%s5 + $0x50] sm:$0xff]
  %v486 = vld [vmem:[%s5 + $0x58] sm:$0xff]
  %v487 = vld [vmem:[%s5 + $0x60] sm:$0xff]
  %v488 = vld [vmem:[%s5 + $0x68] sm:$0xff]
  %v489 = vld [vmem:[%s5 + $0x70] sm:$0xff]
  %v490 = vld [vmem:[%s5 + $0x78] sm:$0xff]
  %v491 = vld [vmem:[%s5 + $0x80] sm:$0xff]
  %v492 = vld [vmem:[%s5 + $0x88] sm:$0xff]
  %v493 = vld [vmem:[%s5 + $0x90] sm:$0xff]
  %v494 = vld [vmem:[%s5 + $0x98] sm:$0xff]
  %v495 = vld [vmem:[%s5 + $0xa0] sm:$0xff]
  %v496 = vld [vmem:[%s5 + $0xa8] sm:$0xff]
  %v497 = vld [vmem:[%s5 + $0xb0] sm:$0xff]
  %v498 = vld [vmem:[%s5 + $0xb8] sm:$0xff]
  %v499 = vld [vmem:[%s5 + $0xc0] sm:$0xff]
  %v500 = vld [vmem:[%s5 + $0xc8] sm:$0xff]
  %v501 = vld [vmem:[%s5 + $0xd0] sm:$0xff]
  %v502 = vld [vmem:[%s5 + $0xd8] sm:$0xff]
  %v503 = vld [vmem:[%s5 + $0xe0] sm:$0xff]
  %v504 = vld [vmem:[%s5 + $0xe8] sm:$0xff]
  %v505 = vld [vmem:[%s5 + $0xf0] sm:$0xff]
  %v506 = vld [vmem:[%s5 + $0xf8] sm:$0xff]
  %v507 = vld [vmem:[%s6] sm:$0x3]
  %v509 = vlaneseq
  %v510 = vshrl.u32 %v509, 7
  %v511 = vsub.s32 0, %v510
  %v512 = vrot.slane %v507, %v511
  %v513 = vlaneseq
  %v514 = vshrl.u32 %v513, 7
  %v515 = vsub.s32 1, %v514
  %v516 = vrot.slane %v507, %v515
  %v551 = vunpack.c.l.b16 %v475
  %v552 = vunpack.c.h.b16 %v475
  %v553 = vunpack.c.l.b16 %v476
  %v554 = vunpack.c.h.b16 %v476
  %v555 = vunpack.c.l.b16 %v477
  %v556 = vunpack.c.h.b16 %v477
  %v557 = vunpack.c.l.b16 %v478
  %v558 = vunpack.c.h.b16 %v478
  %v559 = vunpack.c.l.b16 %v479
  %v560 = vunpack.c.h.b16 %v479
  %v561 = vunpack.c.l.b16 %v480
  %v562 = vunpack.c.h.b16 %v480
  %v563 = vunpack.c.l.b16 %v481
  %v564 = vunpack.c.h.b16 %v481
  %v565 = vunpack.c.l.b16 %v482
  %v566 = vunpack.c.h.b16 %v482
  %v567 = vunpack.c.l.b16 %v483
  %v568 = vunpack.c.h.b16 %v483
  %v569 = vunpack.c.l.b16 %v484
  %v570 = vunpack.c.h.b16 %v484
  %v571 = vunpack.c.l.b16 %v485
  %v572 = vunpack.c.h.b16 %v485
  %v573 = vunpack.c.l.b16 %v486
  %v574 = vunpack.c.h.b16 %v486
  %v575 = vunpack.c.l.b16 %v487
  %v576 = vunpack.c.h.b16 %v487
  %v577 = vunpack.c.l.b16 %v488
  %v578 = vunpack.c.h.b16 %v488
  %v579 = vunpack.c.l.b16 %v489
  %v580 = vunpack.c.h.b16 %v489
  %v581 = vunpack.c.l.b16 %v490
  %v582 = vunpack.c.h.b16 %v490
  %v583 = vunpack.c.l.b16 %v491
  %v584 = vunpack.c.h.b16 %v491
  %v585 = vunpack.c.l.b16 %v492
  %v586 = vunpack.c.h.b16 %v492
  %v587 = vunpack.c.l.b16 %v493
  %v588 = vunpack.c.h.b16 %v493
  %v589 = vunpack.c.l.b16 %v494
  %v590 = vunpack.c.h.b16 %v494
  %v591 = vunpack.c.l.b16 %v495
  %v592 = vunpack.c.h.b16 %v495
  %v593 = vunpack.c.l.b16 %v496
  %v594 = vunpack.c.h.b16 %v496
  %v595 = vunpack.c.l.b16 %v497
  %v596 = vunpack.c.h.b16 %v497
  %v597 = vunpack.c.l.b16 %v498
  %v598 = vunpack.c.h.b16 %v498
  %v599 = vunpack.c.l.b16 %v499
  %v600 = vunpack.c.h.b16 %v499
  %v601 = vunpack.c.l.b16 %v500
  %v602 = vunpack.c.h.b16 %v500
  %v603 = vunpack.c.l.b16 %v501
  %v604 = vunpack.c.h.b16 %v501
  %v605 = vunpack.c.l.b16 %v502
  %v606 = vunpack.c.h.b16 %v502
  %v607 = vunpack.c.l.b16 %v503
  %v608 = vunpack.c.h.b16 %v503
  %v609 = vunpack.c.l.b16 %v504
  %v610 = vunpack.c.h.b16 %v504
  %v611 = vunpack.c.l.b16 %v505
  %v612 = vunpack.c.h.b16 %v505
  %v613 = vunpack.c.l.b16 %v506
  %v614 = vunpack.c.h.b16 %v506
  %v615 = vpack.c.b16 %v553, %v551
  %v616 = vpack.c.b16 %v554, %v552
  %v617 = vpack.c.b16 %v557, %v555
  %v618 = vpack.c.b16 %v558, %v556
  %v619 = vpack.c.b16 %v561, %v559
  %v620 = vpack.c.b16 %v562, %v560
  %v621 = vpack.c.b16 %v565, %v563
  %v622 = vpack.c.b16 %v566, %v564
  %v623 = vpack.c.b16 %v569, %v567
  %v624 = vpack.c.b16 %v570, %v568
  %v625 = vpack.c.b16 %v573, %v571
  %v626 = vpack.c.b16 %v574, %v572
  %v627 = vpack.c.b16 %v577, %v575
  %v628 = vpack.c.b16 %v578, %v576
  %v629 = vpack.c.b16 %v581, %v579
  %v630 = vpack.c.b16 %v582, %v580
  %v631 = vpack.c.b16 %v585, %v583
  %v632 = vpack.c.b16 %v586, %v584
  %v633 = vpack.c.b16 %v589, %v587
  %v634 = vpack.c.b16 %v590, %v588
  %v635 = vpack.c.b16 %v593, %v591
  %v636 = vpack.c.b16 %v594, %v592
  %v637 = vpack.c.b16 %v597, %v595
  %v638 = vpack.c.b16 %v598, %v596
  %v639 = vpack.c.b16 %v601, %v599
  %v640 = vpack.c.b16 %v602, %v600
  %v641 = vpack.c.b16 %v605, %v603
  %v642 = vpack.c.b16 %v606, %v604
  %v643 = vpack.c.b16 %v609, %v607
  %v644 = vpack.c.b16 %v610, %v608
  %v645 = vpack.c.b16 %v613, %v611
  %v646 = vpack.c.b16 %v614, %v612
  %679 = vmatprep.subr.bf16.mxu0 %v616
  %680 = vmatpush1.bf16.msra.mxu0 %v615
  %681 = vmatprep.subr.bf16.mxu0 %v618
  %682 = vmatpush1.bf16.msra.mxu0 %v617
  %683 = vmatprep.subr.bf16.mxu0 %v620
  %684 = vmatpush1.bf16.msra.mxu0 %v619
  %685 = vmatprep.subr.bf16.mxu0 %v622
  %686 = vmatpush1.bf16.msra.mxu0 %v621
  %687 = vmatprep.subr.bf16.mxu0 %v624
  %688 = vmatpush1.bf16.msra.mxu0 %v623
  %689 = vmatprep.subr.bf16.mxu0 %v626
  %690 = vmatpush1.bf16.msra.mxu0 %v625
  %691 = vmatprep.subr.bf16.mxu0 %v628
  %692 = vmatpush1.bf16.msra.mxu0 %v627
  %693 = vmatprep.subr.bf16.mxu0 %v630
  %694 = vmatpush1.bf16.msra.mxu0 %v629
  %695 = vmatprep.subr.bf16.mxu0 %v632
  %696 = vmatpush1.bf16.msra.mxu0 %v631
  %697 = vmatprep.subr.bf16.mxu0 %v634
  %698 = vmatpush1.bf16.msra.mxu0 %v633
  %699 = vmatprep.subr.bf16.mxu0 %v636
  %700 = vmatpush1.bf16.msra.mxu0 %v635
  %701 = vmatprep.subr.bf16.mxu0 %v638
  %702 = vmatpush1.bf16.msra.mxu0 %v637
  %703 = vmatprep.subr.bf16.mxu0 %v640
  %704 = vmatpush1.bf16.msra.mxu0 %v639
  %705 = vmatprep.subr.bf16.mxu0 %v642
  %706 = vmatpush1.bf16.msra.mxu0 %v641
  %707 = vmatprep.subr.bf16.mxu0 %v644
  %708 = vmatpush1.bf16.msra.mxu0 %v643
  %709 = vmatprep.subr.bf16.mxu0 %v646
  %710 = vmatpush1.bf16.msra.mxu0 %v645
  %711 = vmatprep.mubr.bf16.mxu0 %v460
  %712 = vmatmul.mubr.bf16.gmra.mrb[0].mxu0 %v459
  %v713 = vpop.f32.mrb[0].mxu0
  %v714 = vadd.f32 %v512, %v713
  %v715 = vpop.f32.mrb[0].mxu0
  %v716 = vadd.f32 %v516, %v715
  %v717 = vpop.f32.mrb[0].mxu0
  %v718 = vadd.f32 %v512, %v717
  %v719 = vpop.f32.mrb[0].mxu0
  %v720 = vadd.f32 %v516, %v719
  %721 = vmatprep.mubr.bf16.mxu0 %v462
  %722 = vmatmul.mubr.bf16.gmra.mrb[0].mxu0 %v461
  %v723 = vpop.f32.mrb[0].mxu0
  %v724 = vadd.f32 %v512, %v723
  %v725 = vpop.f32.mrb[0].mxu0
  %v726 = vadd.f32 %v516, %v725
  %v727 = vpop.f32.mrb[0].mxu0
  %v728 = vadd.f32 %v512, %v727
  %v729 = vpop.f32.mrb[0].mxu0
  %v730 = vadd.f32 %v516, %v729
  %731 = vmatprep.mubr.bf16.mxu0 %v464
  %732 = vmatmul.mubr.bf16.gmra.mrb[0].mxu0 %v463
  %v733 = vpop.f32.mrb[0].mxu0
  %v734 = vadd.f32 %v512, %v733
  %v735 = vpop.f32.mrb[0].mxu0
  %v736 = vadd.f32 %v516, %v735
  %v737 = vpop.f32.mrb[0].mxu0
  %v738 = vadd.f32 %v512, %v737
  %v739 = vpop.f32.mrb[0].mxu0
  %v740 = vadd.f32 %v516, %v739
  %741 = vmatprep.mubr.bf16.mxu0 %v466
  %742 = vmatmul.mubr.bf16.gmra.mrb[0].mxu0 %v465
  %v743 = vpop.f32.mrb[0].mxu0
  %v744 = vadd.f32 %v512, %v743
  %v745 = vpop.f32.mrb[0].mxu0
  %v746 = vadd.f32 %v516, %v745
  %v747 = vpop.f32.mrb[0].mxu0
  %v748 = vadd.f32 %v512, %v747
  %v749 = vpop.f32.mrb[0].mxu0
  %v750 = vadd.f32 %v516, %v749
  %751 = vmatprep.mubr.bf16.mxu0 %v468
  %752 = vmatmul.mubr.bf16.gmra.mrb[0].mxu0 %v467
  %v753 = vpop.f32.mrb[0].mxu0
  %v754 = vadd.f32 %v512, %v753
  %v755 = vpop.f32.mrb[0].mxu0
  %v756 = vadd.f32 %v516, %v755
  %v757 = vpop.f32.mrb[0].mxu0
  %v758 = vadd.f32 %v512, %v757
  %v759 = vpop.f32.mrb[0].mxu0
  %v760 = vadd.f32 %v516, %v759
  %761 = vmatprep.mubr.bf16.mxu0 %v470
  %762 = vmatmul.mubr.bf16.gmra.mrb[0].mxu0 %v469
  %v763 = vpop.f32.mrb[0].mxu0
  %v764 = vadd.f32 %v512, %v763
  %v765 = vpop.f32.mrb[0].mxu0
  %v766 = vadd.f32 %v516, %v765
  %v767 = vpop.f32.mrb[0].mxu0
  %v768 = vadd.f32 %v512, %v767
  %v769 = vpop.f32.mrb[0].mxu0
  %v770 = vadd.f32 %v516, %v769
  %771 = vmatprep.mubr.bf16.mxu0 %v472
  %772 = vmatmul.mubr.bf16.gmra.mrb[0].mxu0 %v471
  %v773 = vpop.f32.mrb[0].mxu0
  %v774 = vadd.f32 %v512, %v773
  %v775 = vpop.f32.mrb[0].mxu0
  %v776 = vadd.f32 %v516, %v775
  %v777 = vpop.f32.mrb[0].mxu0
  %v778 = vadd.f32 %v512, %v777
  %v779 = vpop.f32.mrb[0].mxu0
  %v780 = vadd.f32 %v516, %v779
  %781 = vmatprep.mubr.bf16.mxu0 %v474
  %782 = vmatmul.mubr.bf16.gmra.mrb[0].mxu0 %v473
  %v783 = vpop.f32.mrb[0].mxu0
  %v784 = vadd.f32 %v512, %v783
  %v785 = vpop.f32.mrb[0].mxu0
  %v786 = vadd.f32 %v516, %v785
  %v787 = vpop.f32.mrb[0].mxu0
  %v788 = vadd.f32 %v512, %v787
  %v789 = vpop.f32.mrb[0].mxu0
  %v790 = vadd.f32 %v516, %v789
  %791 = vdwg.mxu0
  %v792 = vmax.f32 %v714, 0.0
  %v793 = vmax.f32 %v716, 0.0
  %v794 = vmax.f32 %v718, 0.0
  %v795 = vmax.f32 %v720, 0.0
  %v796 = vmax.f32 %v724, 0.0
  %v797 = vmax.f32 %v726, 0.0
  %v798 = vmax.f32 %v728, 0.0
  %v799 = vmax.f32 %v730, 0.0
  %v800 = vmax.f32 %v734, 0.0
  %v801 = vmax.f32 %v736, 0.0
  %v802 = vmax.f32 %v738, 0.0
  %v803 = vmax.f32 %v740, 0.0
  %v804 = vmax.f32 %v744, 0.0
  %v805 = vmax.f32 %v746, 0.0
  %v806 = vmax.f32 %v748, 0.0
  %v807 = vmax.f32 %v750, 0.0
  %v808 = vmax.f32 %v754, 0.0
  %v809 = vmax.f32 %v756, 0.0
  %v810 = vmax.f32 %v758, 0.0
  %v811 = vmax.f32 %v760, 0.0
  %v812 = vmax.f32 %v764, 0.0
  %v813 = vmax.f32 %v766, 0.0
  %v814 = vmax.f32 %v768, 0.0
  %v815 = vmax.f32 %v770, 0.0
  %v816 = vmax.f32 %v774, 0.0
  %v817 = vmax.f32 %v776, 0.0
  %v818 = vmax.f32 %v778, 0.0
  %v819 = vmax.f32 %v780, 0.0
  %v820 = vmax.f32 %v784, 0.0
  %v821 = vmax.f32 %v786, 0.0
  %v822 = vmax.f32 %v788, 0.0
  %v823 = vmax.f32 %v790, 0.0
  %v824 = vld [vmem:[%s7] sm:$0x3]
  %s825 = sld [smem:[#allocation2]]
  %v826 = vstv %s825
  %v828 = vlaneseq
  %v829 = vshrl.u32 %v828, 7
  %v830 = vsub.s32 0, %v829
  %v831 = vrot.slane %v824, %v830
  %v832 = vlaneseq
  %v833 = vshrl.u32 %v832, 7
  %v834 = vsub.s32 1, %v833
  %v835 = vrot.slane %v824, %v834
  %838 = vmatprep.subr.mxu0 %v793
  %839 = vmatpush1.xpose.msra.mxu0 %v792
  %840 = vmatprep.subr.mxu0 %v795
  %841 = vmatpush1.xpose.msra.mxu0 %v794
  %842 = vmatprep.subr.mxu0 %v797
  %843 = vmatpush1.xpose.msra.mxu0 %v796
  %844 = vmatprep.subr.mxu0 %v799
  %845 = vmatpush1.xpose.msra.mxu0 %v798
  %846 = vmatprep.subr.mxu0 %v801
  %847 = vmatpush1.xpose.msra.mxu0 %v800
  %848 = vmatprep.subr.mxu0 %v803
  %849 = vmatpush1.xpose.msra.mxu0 %v802
  %850 = vmatprep.subr.mxu0 %v805
  %851 = vmatpush1.xpose.msra.mxu0 %v804
  %852 = vmatprep.subr.mxu0 %v807
  %853 = vmatpush1.xpose.msra.mxu0 %v806
  %854 = vmatprep.subr.mxu0 %v809
  %855 = vmatpush1.xpose.msra.mxu0 %v808
  %856 = vmatprep.subr.mxu0 %v811
  %857 = vmatpush1.xpose.msra.mxu0 %v810
  %858 = vmatprep.subr.mxu0 %v813
  %859 = vmatpush1.xpose.msra.mxu0 %v812
  %860 = vmatprep.subr.mxu0 %v815
  %861 = vmatpush1.xpose.msra.mxu0 %v814
  %862 = vmatprep.subr.mxu0 %v817
  %863 = vmatpush1.xpose.msra.mxu0 %v816
  %864 = vmatprep.subr.mxu0 %v819
  %865 = vmatpush1.xpose.msra.mxu0 %v818
  %866 = vmatprep.subr.mxu0 %v821
  %867 = vmatpush1.xpose.msra.mxu0 %v820
  %868 = vmatprep.subr.mxu0 %v823
  %869 = vmatpush1.xpose.msra.mxu0 %v822
  %870 = vmatprep.subr.mxu0 0.0
  %871 = vmatpush1.xpose.msra.mxu0 0.0
  %872 = vmatprep.subr.mxu0 0.0
  %873 = vmatpush1.xpose.msra.mxu0 0.0
  %874 = vmatprep.subr.mxu0 0.0
  %875 = vmatpush1.xpose.msra.mxu0 0.0
  %876 = vmatprep.subr.mxu0 0.0
  %877 = vmatpush1.xpose.msra.mxu0 0.0
  %878 = vmatprep.subr.mxu0 0.0
  %879 = vmatpush1.xpose.msra.mxu0 0.0
  %880 = vmatprep.subr.mxu0 0.0
  %881 = vmatpush1.xpose.msra.mxu0 0.0
  %882 = vmatprep.subr.mxu0 0.0
  %883 = vmatpush1.xpose.msra.mxu0 0.0
  %884 = vmatprep.subr.mxu0 0.0
  %885 = vmatpush1.xpose.msra.mxu0 0.0
  %886 = vmatprep.subr.mxu0 0.0
  %887 = vmatpush1.xpose.msra.mxu0 0.0
  %888 = vmatprep.subr.mxu0 0.0
  %889 = vmatpush1.xpose.msra.mxu0 0.0
  %890 = vmatprep.subr.mxu0 0.0
  %891 = vmatpush1.xpose.msra.mxu0 0.0
  %892 = vmatprep.subr.mxu0 0.0
  %893 = vmatpush1.xpose.msra.mxu0 0.0
  %894 = vmatprep.subr.mxu0 0.0
  %895 = vmatpush1.xpose.msra.mxu0 0.0
  %896 = vmatprep.subr.mxu0 0.0
  %897 = vmatpush1.xpose.msra.mxu0 0.0
  %898 = vmatprep.subr.mxu0 0.0
  %899 = vmatpush1.xpose.msra.mxu0 0.0
  %900 = vmatprep.subr.mxu0 0.0
  %901 = vmatpush1.xpose.msra.mxu0 0.0
  %902 = vmatprep.mubr.f32.mxu0 %v835
  %903 = vmatmul.mubr.f32.gmra.mrb[0].mxu0 %v831
  %v904 = vpop.f32.mrb[0].mxu0
  %v905 = vadd.f32 %v826, %v904
  %v906 = vpop.f32.mrb[0].mxu0
  %907 = vdwg.mxu0
  %908 = vst [vmem:[%s9] sm:$0x1] %v905
  // Predicated region
  $region38: #{critic_forward.1} parent=0 // pred_check
    _
  $region39: #{critic_forward.1} parent=0 // pred_check_branch
    %910 = sbr.rel (0) target = $region41
  $region40: #{critic_forward.1} parent=0 // pred_region
    _
  $region41: #{critic_forward.1} parent=0 // pred_fallthru
    _
  // Predicated region
  $region42: #{critic_forward.1} parent=0 // pred_check
    _
  $region43: #{critic_forward.1} parent=0 // pred_check_branch
    %912 = sbr.rel (0) target = $region45
  $region44: #{critic_forward.1} parent=0 // pred_region
    _
  $region45: #{critic_forward.1} parent=0 // pred_fallthru
    _

</llo_original>
